<compile_context>
chip_gen: v5e
topology: v5e:2x2
jax: 0.10.0
libtpu: 0.0.40
codegen_flags: <defaults>
</compile_context>

<pallas_src>
import jax
import jax.numpy as jnp
from jax.experimental import pallas as pl
from jax.experimental.pallas import tpu as pltpu

_NARROW_LANES = 128      # minimum lane width (vreg lane count)
_WIDE_LANES = 1024       # wide lane slab for larger arrays (store-path lever)
_TILE_ROWS = 512         # 512 x 1024 f32 = 2 MiB per tile (v7x-safe)


# ---------------- tensor / tensor branch:  c = a / b ; out = c / c ----------
def _div_div_kernel(a_ref, b_ref, o_ref):
    c = a_ref[...] / b_ref[...]
    o_ref[...] = c / c          # intentionally NOT folded to ones (NaN/Inf semantics)


# ---------------- scalar branch:  out = (a * a) * (1 / b_scalar) ------------
def _sq_div_scalar_kernel(s_ref, a_ref, o_ref):
    inv = 1.0 / s_ref[0]        # scalar reciprocal hoisted out of the vector op
    a = a_ref[...]
    o_ref[...] = (a * a) * inv


# ---------------- slab planning / packing -----------------------------------
def _plan_slab(total):
    """Pick (rows, cols, tile_rows) for a lane-dense, tileable 2-D slab."""
    cols = _WIDE_LANES if total >= _WIDE_LANES * 8 else _NARROW_LANES
    rows = -(-total // cols)                     # ceil-div
    if rows <= _TILE_ROWS:
        tile_rows = rows                         # single tile == full array dims (legal)
    else:
        tile_rows = _TILE_ROWS
        rows = -(-rows // tile_rows) * tile_rows  # pad rows to a tile multiple
    return int(rows), int(cols), int(tile_rows)


def _to_slab(x, rows, cols):
    """Flatten and pad x (with 1.0) into a (rows, cols) lane-dense slab."""
    total = x.size
    flat = x.reshape(total)
    pad = rows * cols - total
    if pad:
        flat = jnp.pad(flat, (0, pad), constant_values=1.0)
    return flat.reshape(rows, cols)


# ---------------- pallas_call wrappers ---------------------------------------
def _run_div_div(a2d, b2d, tile_rows):
    rows, cols = a2d.shape
    spec = pl.BlockSpec((tile_rows, cols), lambda i: (i, 0))
    return pl.pallas_call(
        _div_div_kernel,
        out_shape=jax.ShapeDtypeStruct((rows, cols), a2d.dtype),
        grid=(rows // tile_rows,),
        in_specs=[spec, spec],
        out_specs=spec,
        compiler_params=pltpu.CompilerParams(dimension_semantics=("parallel",)),
    )(a2d, b2d)


def _run_sq_div_scalar(s, a2d, tile_rows):
    rows, cols = a2d.shape
    spec = pl.BlockSpec((tile_rows, cols), lambda i: (i, 0))
    return pl.pallas_call(
        _sq_div_scalar_kernel,
        out_shape=jax.ShapeDtypeStruct((rows, cols), a2d.dtype),
        grid=(rows // tile_rows,),
        in_specs=[
            pl.BlockSpec(memory_space=pltpu.SMEM),   # scalar b (as a (1,) array)
            spec,
        ],
        out_specs=spec,
        compiler_params=pltpu.CompilerParams(dimension_semantics=("parallel",)),
    )(s.reshape(1), a2d)


# ---------------- public entry point ------------------------------------------
def simple_div(a, b):
    """JAX/Pallas equivalent of SimpleDivModule.forward."""
    a = jnp.asarray(a, jnp.float32)
    b = jnp.asarray(b, jnp.float32)

    if b.ndim == 0:
        orig_shape = a.shape
        total = int(a.size)
        rows, cols, tile_rows = _plan_slab(total)
        a2d = _to_slab(a, rows, cols)
        out2d = _run_sq_div_scalar(b, a2d, tile_rows)
    else:
        a_b, b_b = jnp.broadcast_arrays(a, b)
        orig_shape = a_b.shape
        total = int(a_b.size)
        rows, cols, tile_rows = _plan_slab(total)
        a2d = _to_slab(a_b, rows, cols)
        b2d = _to_slab(b_b, rows, cols)
        out2d = _run_div_div(a2d, b2d, tile_rows)

    return out2d.reshape(rows * cols)[:total].reshape(orig_shape)


if __name__ == "__main__":
    key = jax.random.PRNGKey(0)
    k1, k2 = jax.random.split(key)

    # NCHW-like input, small shapes: batch=2, channels=4, spatial=16x16
    a = jax.random.uniform(k1, (2, 4, 16, 16), jnp.float32, minval=0.5, maxval=2.0)
    b = jax.random.uniform(k2, (2, 4, 16, 16), jnp.float32, minval=0.5, maxval=2.0)

    # tensor / tensor branch: c = a / b ; c / c
    out = jax.block_until_ready(simple_div(a, b))
    ref_c = a / b
    ref = ref_c / ref_c
    assert out.shape == a.shape
    assert jnp.allclose(out, ref, rtol=1e-6, atol=1e-6), "tensor branch mismatch"

    # scalar branch ( b.size() == torch.Size([]) ): (a * a) / b.item()
    b_scalar = jnp.float32(3.5)
    out_s = jax.block_until_ready(simple_div(a, b_scalar))
    ref_s = (a * a) / 3.5
    assert out_s.shape == a.shape
    assert jnp.allclose(out_s, ref_s, rtol=1e-5, atol=1e-6), "scalar branch mismatch"

    print("KERNEL_OK")
</pallas_src>

<mosaic_0001>
module attributes {stable_mosaic.version = 11 : i64} {
  func.func @_div_div_kernel(%arg0: i32, %arg1: memref<16x128xf32, #tpu.memory_space<vmem>>, %arg2: memref<16x128xf32, #tpu.memory_space<vmem>>, %arg3: memref<16x128xf32, #tpu.memory_space<vmem>>) attributes {dimension_semantics = [#tpu.dimension_semantics<parallel>], iteration_bounds = array<i64: 1>, scalar_prefetch = 0 : i64, scratch_operands = 0 : i64, tpu.core_type = #tpu.core_type<tc>, window_params = [{transform_indices = @transform_0, window_bounds = array<i64: 16, 128>}, {transform_indices = @transform_1, window_bounds = array<i64: 16, 128>}, {transform_indices = @transform_2, window_bounds = array<i64: 16, 128>}]} {
    %c0 = arith.constant 0 : index
    %c0_0 = arith.constant 0 : index
    %0 = vector.load %arg1[%c0, %c0_0] : memref<16x128xf32, #tpu.memory_space<vmem>>, vector<16x128xf32>
    %c0_1 = arith.constant 0 : index
    %c0_2 = arith.constant 0 : index
    %1 = vector.load %arg2[%c0_1, %c0_2] : memref<16x128xf32, #tpu.memory_space<vmem>>, vector<16x128xf32>
    %2 = arith.divf %0, %1 : vector<16x128xf32>
    %3 = arith.divf %2, %2 : vector<16x128xf32>
    %c0_3 = arith.constant 0 : index
    %c0_4 = arith.constant 0 : index
    %4 = vector.load %arg3[%c0_3, %c0_4] : memref<16x128xf32, #tpu.memory_space<vmem>>, vector<16x128xf32>
    tpu.vector_store %arg3[%c0_3, %c0_4], %3 {strides = array<i32>} : memref<16x128xf32, #tpu.memory_space<vmem>>, vector<16x128xf32>,
    return
  }
  func.func @transform_0(%arg0: i32) -> (i32, i32) {
    %c0_i32 = arith.constant 0 : i32
    %c0_i32_0 = arith.constant 0 : i32
    return %arg0, %c0_i32 : i32, i32
  }
  func.func @transform_1(%arg0: i32) -> (i32, i32) {
    %c0_i32 = arith.constant 0 : i32
    %c0_i32_0 = arith.constant 0 : i32
    return %arg0, %c0_i32 : i32, i32
  }
  func.func @transform_2(%arg0: i32) -> (i32, i32) {
    %c0_i32 = arith.constant 0 : i32
    %c0_i32_0 = arith.constant 0 : i32
    return %arg0, %c0_i32 : i32, i32
  }
}

</mosaic_0001>

<llo_original>
// kernel: tpu_custom_call.1
$region0: #{tpu_custom_call.1}
  #allocation0 [shape = 'u32[]', space=smem, size = 0x4, offset = 0x4, fixed_abs, tag = 'smem constant byte address 0x4 - core index']
  #allocation1 [shape = 'u32[72,128]{1,0:T(1,128)}', space=vmem, size = 0x9000, scoped, tag = 'internal scratch']
  %s0 = inlined_call_operand.hbm [shape: f32[16,128], index: 0, kind: input, shape index: {}]
  %s1 = inlined_call_operand.hbm [shape: f32[16,128], index: 1, kind: input, shape index: {}]
  %s2 = inlined_call_operand.hbm [shape: f32[16,128], index: 2, kind: output, shape index: {}]
  %s3 = sld [smem:[#allocation0]]
  $region26: #{tpu_custom_call.1} parent=0
    _
  %s5 = ssub.s32 1, %s3
  %s6 = scalar_select 0, %s5, %s3
  $region1: #{tpu_custom_call.1} parent=0
    #allocation2 [shape = 'u8[8192]{0}', space=vmem, size = 0x2000, scoped, tag = 'input window, operand 0, single buffered']
    #allocation3 [shape = 's32[1]{0}', space=sflag, size = 0x4, scoped, tag = 'scoped memory for tpu_custom_call.1']
    #allocation4 [shape = 's32[1]{0}', space=sflag, size = 0x4, scoped, tag = 'scoped memory for tpu_custom_call.1']
    #allocation5 [shape = 'u8[8192]{0}', space=vmem, size = 0x2000, scoped, tag = 'input window, operand 1, single buffered']
    #allocation6 [shape = 's32[1]{0}', space=sflag, size = 0x4, scoped, tag = 'scoped memory for tpu_custom_call.1']
    #allocation7 [shape = 'u8[8192]{0}', space=vmem, size = 0x2000, scoped, tag = 'output window, operand 0, single buffered']
    %7 = vsyncpa [#allocation3], 0
    %8 = vsyncpa [#allocation6], 0
    %9 = vsyncpa [#allocation4], 0
    // Predicated region
    $region2: #{tpu_custom_call.1} parent=1 // pred_check
      _
    $region3: #{tpu_custom_call.1} parent=1 // pred_check_branch
      %11 = sbr.rel (0) target = $region5
    $region4: #{tpu_custom_call.1} parent=1 // pred_region
      %13 = vsyncadd [#allocation3], 0
      %s14 = sshll.u32 %s0, 4
      %s15 = int_to_ptr.hbm [resolvable:$true] %s14
      %s16 = sshll.u32 [#allocation2], 4
      %s17 = int_to_ptr.vmem [resolvable:$true] %s16
      %22 = dma.hbm_to_vmem [thread:$0]  %s15, 256, %s17, [#allocation3], 128, 128, 8
    $region5: #{tpu_custom_call.1} parent=1 // pred_fallthru
      _
    // Predicated region
    $region6: #{tpu_custom_call.1} parent=1 // pred_check
      _
    $region7: #{tpu_custom_call.1} parent=1 // pred_check_branch
      %24 = sbr.rel (0) target = $region9
    $region8: #{tpu_custom_call.1} parent=1 // pred_region
      %26 = vsyncadd [#allocation6], 0
      %s27 = sshll.u32 %s1, 4
      %s28 = int_to_ptr.hbm [resolvable:$true] %s27
      %s29 = sshll.u32 [#allocation5], 4
      %s30 = int_to_ptr.vmem [resolvable:$true] %s29
      %35 = dma.hbm_to_vmem [thread:$0]  %s28, 256, %s30, [#allocation6], 128, 128, 8
    $region9: #{tpu_custom_call.1} parent=1 // pred_fallthru
      _
    // Predicated region
    $region10: #{tpu_custom_call.1} parent=1 // pred_check
      _
    $region11: #{tpu_custom_call.1} parent=1 // pred_check_branch
      %37 = sbr.rel (0) target = $region13
    $region12: #{tpu_custom_call.1} parent=1 // pred_region
      %39 = dma.done [#allocation3], 256
    $region13: #{tpu_custom_call.1} parent=1 // pred_fallthru
      _
    // Predicated region
    $region14: #{tpu_custom_call.1} parent=1 // pred_check
      _
    $region15: #{tpu_custom_call.1} parent=1 // pred_check_branch
      %41 = sbr.rel (0) target = $region17
    $region16: #{tpu_custom_call.1} parent=1 // pred_region
      %43 = dma.done [#allocation6], 256
    $region17: #{tpu_custom_call.1} parent=1 // pred_fallthru
      _
    %v44 = vld [vmem:[#allocation2] sm:$0xff]
    %v45 = vld [vmem:[#allocation2 + $0x8] sm:$0xff]
    %v46 = vld [vmem:[#allocation5] sm:$0xff]
    %v47 = vld [vmem:[#allocation5 + $0x8] sm:$0xff]
    %v48 = vrcp.pop %v46
    %v49 = vmul.f32 %v46, %v48
    %v50 = vsub.f32 1.0, %v49
    %v51 = vmul.f32 %v48, %v50
    %v52 = vadd.f32 %v48, %v51
    %vm53 = vweird.f32 %v46
    %vm54 = vweird.f32 %v48
    %vm55 = vmor %vm53, %vm54
    %v56 = vsel %vm55, %v48, %v52
    %v57 = vand.u32 2147483647, %v46
    %vm58 = vcmp.eq.f32.partialorder %v57, 8.507059e+37
    %v59 = vand.u32 %v46, 2147483648
    %v60 = vor.u32 1.1754944e-38, %v59
    %v61 = vsel %vm58, %v60, %v56
    %v62 = vmul.f32 %v44, %v61
    %v63 = vrcp.pop %v47
    %v64 = vmul.f32 %v47, %v63
    %v65 = vsub.f32 1.0, %v64
    %v66 = vmul.f32 %v63, %v65
    %v67 = vadd.f32 %v63, %v66
    %vm68 = vweird.f32 %v47
    %vm69 = vweird.f32 %v63
    %vm70 = vmor %vm68, %vm69
    %v71 = vsel %vm70, %v63, %v67
    %v72 = vand.u32 2147483647, %v47
    %vm73 = vcmp.eq.f32.partialorder %v72, 8.507059e+37
    %v74 = vand.u32 %v47, 2147483648
    %v75 = vor.u32 1.1754944e-38, %v74
    %v76 = vsel %vm73, %v75, %v71
    %v77 = vmul.f32 %v45, %v76
    %v78 = vrcp.pop %v62
    %v79 = vmul.f32 %v62, %v78
    %v80 = vsub.f32 1.0, %v79
    %v81 = vmul.f32 %v78, %v80
    %v82 = vadd.f32 %v78, %v81
    %vm83 = vweird.f32 %v62
    %vm84 = vweird.f32 %v78
    %vm85 = vmor %vm83, %vm84
    %v86 = vsel %vm85, %v78, %v82
    %v87 = vand.u32 2147483647, %v62
    %vm88 = vcmp.eq.f32.partialorder %v87, 8.507059e+37
    %v89 = vand.u32 %v62, 2147483648
    %v90 = vor.u32 1.1754944e-38, %v89
    %v91 = vsel %vm88, %v90, %v86
    %v92 = vmul.f32 %v62, %v91
    %v93 = vrcp.pop %v77
    %v94 = vmul.f32 %v77, %v93
    %v95 = vsub.f32 1.0, %v94
    %v96 = vmul.f32 %v93, %v95
    %v97 = vadd.f32 %v93, %v96
    %vm98 = vweird.f32 %v77
    %vm99 = vweird.f32 %v93
    %vm100 = vmor %vm98, %vm99
    %v101 = vsel %vm100, %v93, %v97
    %v102 = vand.u32 2147483647, %v77
    %vm103 = vcmp.eq.f32.partialorder %v102, 8.507059e+37
    %v104 = vand.u32 %v77, 2147483648
    %v105 = vor.u32 1.1754944e-38, %v104
    %v106 = vsel %vm103, %v105, %v101
    %v107 = vmul.f32 %v77, %v106
    %108 = vst [vmem:[#allocation7] sm:$0xff] %v92
    %109 = vst [vmem:[#allocation7 + $0x8] sm:$0xff] %v107
    // Predicated region
    $region18: #{tpu_custom_call.1} parent=1 // pred_check
      _
    $region19: #{tpu_custom_call.1} parent=1 // pred_check_branch
      %111 = sbr.rel (0) target = $region21
    $region20: #{tpu_custom_call.1} parent=1 // pred_region
      %113 = vsyncadd [#allocation4], 0
      %s114 = sshll.u32 [#allocation7], 4
      %s115 = int_to_ptr.vmem [resolvable:$true] %s114
      %s116 = sshll.u32 %s2, 4
      %s117 = int_to_ptr.hbm [resolvable:$true] %s116
      %122 = dma.vmem_to_hbm [thread:$0]  %s115, 256, %s117, [#allocation4], 128, 128, 8
    $region21: #{tpu_custom_call.1} parent=1 // pred_fallthru
      _
    // Predicated region
    $region22: #{tpu_custom_call.1} parent=1 // pred_check
      _
    $region23: #{tpu_custom_call.1} parent=1 // pred_check_branch
      %124 = sbr.rel (0) target = $region25
    $region24: #{tpu_custom_call.1} parent=1 // pred_region
      %126 = dma.done [#allocation4], 256
    $region25: #{tpu_custom_call.1} parent=1 // pred_fallthru
      _
    %127 = vsyncpa [#allocation3], 1
    %128 = vsyncpa [#allocation6], 1
    %129 = vsyncpa [#allocation4], 1

</llo_original>
